<compile_context>
chip_gen: v7x
topology: tpu7x:2x2x1
jax: 0.10.0
libtpu: 0.0.40
codegen_flags: <defaults>
</compile_context>

<pallas_src>
import functools
import math

import jax
import jax.numpy as jnp
from jax import lax
from jax.experimental import pallas as pl
from jax.experimental.pallas import tpu as pltpu

_SQRT_HALF = 0.7071067811865476


def _erf_approx(z):
    # Abramowitz & Stegun 7.1.26 (max abs err ~1.5e-7).  Uses only VPU mul/add
    # and EUP exp, so it lowers cleanly in Mosaic (exact-GELU semantics kept).
    p = 0.3275911
    a1, a2, a3, a4, a5 = (0.254829592, -0.284496736, 1.421413741,
                          -1.453152027, 1.061405429)
    az = jnp.abs(z)
    t = 1.0 / (1.0 + p * az)
    poly = ((((a5 * t + a4) * t + a3) * t + a2) * t + a1) * t
    y = 1.0 - poly * jnp.exp(-az * az)
    return jnp.where(z >= 0.0, y, -y)


def _gelu_exact(x):
    return 0.5 * x * (1.0 + _erf_approx(x * _SQRT_HALF))


def _pick_seq_tile(s, target=256):
    """Largest multiple of 8 <= target dividing s (or s itself if small)."""
    if s <= target:
        return s
    t = (target // 8) * 8
    while t >= 8:
        if s % t == 0:
            return t
        t -= 8
    return s


# --------------------------- kernel 1: LN + QKV -----------------------------
def _ln_qkv_kernel(x_ref, g_ref, w_ref, qkv_ref, *, eps):
    x = x_ref[0]                                            # (TS, H) f32
    mean = jnp.mean(x, axis=-1, keepdims=True)
    var = jnp.mean(x * x, axis=-1, keepdims=True) - mean * mean   # one-pass
    xn = (x - mean) * lax.rsqrt(var + eps) * g_ref[...]     # (TS, H)
    qkv_ref[0] = jnp.dot(xn, w_ref[...],
                         preferred_element_type=jnp.float32).astype(qkv_ref.dtype)


# --------------------------- kernel 2: attention ----------------------------
def _attention_kernel(q_ref, k_ref, v_ref, bias_ref, o_ref):
    q = q_ref[0, 0]                                         # (S, hd)
    k = k_ref[0, 0]                                         # (S, hd)
    v = v_ref[0, 0]                                         # (S, hd)
    # q @ k^T via contracting the head dims (q already carries the 1/sqrt(d) scale).
    scores = lax.dot_general(q, k, (((1,), (1,)), ((), ())),
                             preferred_element_type=jnp.float32)   # (S, S)
    scores = scores + bias_ref[...]                         # (S,S) + (1,S) additive mask
    m = jnp.max(scores, axis=-1, keepdims=True)
    e = jnp.exp(scores - m)
    p = e / jnp.sum(e, axis=-1, keepdims=True)
    o_ref[0, 0] = jnp.dot(p, v,
                          preferred_element_type=jnp.float32).astype(o_ref.dtype)


# ---------------- kernel 3: out-proj + residual + LN + FFN + residual -------
def _out_ffn_kernel(ctx_ref, x_ref, wo_ref, g_ref, wi_ref, wd_ref, o_ref, *, eps):
    attn_out = jnp.dot(ctx_ref[0], wo_ref[...],
                       preferred_element_type=jnp.float32) + x_ref[0]   # (TS, H)
    mean = jnp.mean(attn_out, axis=-1, keepdims=True)
    var = jnp.mean(attn_out * attn_out, axis=-1, keepdims=True) - mean * mean
    h = (attn_out - mean) * lax.rsqrt(var + eps) * g_ref[...]
    inter = _gelu_exact(jnp.dot(h, wi_ref[...],
                                preferred_element_type=jnp.float32))    # (TS, FFN)
    out = jnp.dot(inter, wd_ref[...],
                  preferred_element_type=jnp.float32) + attn_out
    o_ref[0] = out.astype(o_ref.dtype)


# ------------------------------- wrapper ------------------------------------
def prolm_layer(hidden_states, attn_bias,
                wq, wk, wv, wo, ln_attn_w,
                wi, wdown, ln_ffn_w,
                *, num_heads, eps=1e-5, seq_tile=None):
    """Forward pass of ProLMLayer.

    hidden_states: (B, S, H) float.
    attn_bias:     (B, S) additive attention bias (0 keep / large negative mask),
                   broadcast over heads and query positions; or None.
    wq/wk/wv/wo:   (H, H) PyTorch nn.Linear layout (out, in), bias-free.
    wi:            (FFN, H), wdown: (H, FFN).
    ln_attn_w / ln_ffn_w: (H,) bias-free LayerNorm weights.
    """
    B, S, H = hidden_states.shape
    assert H % num_heads == 0
    hd = H // num_heads
    ffn_dim = wi.shape[0]

    x = hidden_states.astype(jnp.float32)
    if attn_bias is None:
        attn_bias = jnp.zeros((B, S), jnp.float32)
    bias = attn_bias.astype(jnp.float32)

    # Pre-transpose weights to (in, out) so kernels run (S,K)x(K,N) matmuls;
    # fold the 1/sqrt(head_dim) query scale into Wq.
    scale = 1.0 / math.sqrt(hd)
    w_qkv = jnp.concatenate([(wq * scale).T, wk.T, wv.T], axis=1).astype(jnp.float32)
    wo_t = wo.T.astype(jnp.float32)                          # (H, H)
    wi_t = wi.T.astype(jnp.float32)                          # (H, FFN)
    wd_t = wdown.T.astype(jnp.float32)                       # (FFN, H)
    g1 = ln_attn_w.reshape(1, H).astype(jnp.float32)
    g2 = ln_ffn_w.reshape(1, H).astype(jnp.float32)

    ts = seq_tile or _pick_seq_tile(S)
    assert S % ts == 0
    grid_bs = (B, S // ts)
    par2 = pltpu.CompilerParams(dimension_semantics=("parallel", "parallel"))

    # ---- 1) fused pre-LN + stacked QKV projection (grid over batch, seq tile)
    qkv = pl.pallas_call(
        functools.partial(_ln_qkv_kernel, eps=eps),
        out_shape=jax.ShapeDtypeStruct((B, S, 3 * H), jnp.float32),
        grid_spec=pltpu.PrefetchScalarGridSpec(
            num_scalar_prefetch=0,
            grid=grid_bs,
            in_specs=[
                pl.BlockSpec((1, ts, H), lambda b, s: (b, s, 0)),
                pl.BlockSpec((1, H), lambda b, s: (0, 0)),       # LN weight (const)
                pl.BlockSpec((H, 3 * H), lambda b, s: (0, 0)),   # stacked W (const)
            ],
            out_specs=pl.BlockSpec((1, ts, 3 * H), lambda b, s: (b, s, 0)),
        ),
        compiler_params=par2,
    )(x, g1, w_qkv)

    q, k, v = jnp.split(qkv, 3, axis=-1)

    def to_heads(t):  # (B, S, H) -> (B, nh, S, hd); layout plumbing done by XLA
        return t.reshape(B, S, num_heads, hd).transpose(0, 2, 1, 3)

    qh, kh, vh = to_heads(q), to_heads(k), to_heads(v)

    # ---- 2) attention, one (batch, head) pair per grid step
    ctx_h = pl.pallas_call(
        _attention_kernel,
        out_shape=jax.ShapeDtypeStruct((B, num_heads, S, hd), jnp.float32),
        grid_spec=pltpu.PrefetchScalarGridSpec(
            num_scalar_prefetch=0,
            grid=(B, num_heads),
            in_specs=[
                pl.BlockSpec((1, 1, S, hd), lambda b, h: (b, h, 0, 0)),
                pl.BlockSpec((1, 1, S, hd), lambda b, h: (b, h, 0, 0)),
                pl.BlockSpec((1, 1, S, hd), lambda b, h: (b, h, 0, 0)),
                pl.BlockSpec((1, S), lambda b, h: (b, 0)),       # lane-dense mask row
            ],
            out_specs=pl.BlockSpec((1, 1, S, hd), lambda b, h: (b, h, 0, 0)),
        ),
        compiler_params=par2,
    )(qh, kh, vh, bias)

    ctx = ctx_h.transpose(0, 2, 1, 3).reshape(B, S, H)

    # ---- 3) output projection + residual + pre-LN FFN + residual
    out = pl.pallas_call(
        functools.partial(_out_ffn_kernel, eps=eps),
        out_shape=jax.ShapeDtypeStruct((B, S, H), jnp.float32),
        grid_spec=pltpu.PrefetchScalarGridSpec(
            num_scalar_prefetch=0,
            grid=grid_bs,
            in_specs=[
                pl.BlockSpec((1, ts, H), lambda b, s: (b, s, 0)),    # ctx tile
                pl.BlockSpec((1, ts, H), lambda b, s: (b, s, 0)),    # residual (x) tile
                pl.BlockSpec((H, H), lambda b, s: (0, 0)),           # Wo^T (const)
                pl.BlockSpec((1, H), lambda b, s: (0, 0)),           # LN weight (const)
                pl.BlockSpec((H, ffn_dim), lambda b, s: (0, 0)),     # Wi^T (const)
                pl.BlockSpec((ffn_dim, H), lambda b, s: (0, 0)),     # Wd^T (const)
            ],
            out_specs=pl.BlockSpec((1, ts, H), lambda b, s: (b, s, 0)),
        ),
        compiler_params=par2,
    )(ctx, x, wo_t, g2, wi_t, wd_t)

    return out


# ------------------------------ pure-JAX reference --------------------------
def _reference(x, attn_bias, wq, wk, wv, wo, g1, wi, wdown, g2, *, num_heads, eps=1e-5):
    B, S, H = x.shape
    hd = H // num_heads

    def ln(y, g):
        m = y.mean(-1, keepdims=True)
        v = ((y - m) ** 2).mean(-1, keepdims=True)
        return (y - m) / jnp.sqrt(v + eps) * g

    def heads(t):
        return t.reshape(B, S, num_heads, hd).transpose(0, 2, 1, 3)

    h = ln(x, g1)
    q = heads(h @ wq.T) * (hd ** -0.5)
    k = heads(h @ wk.T)
    v = heads(h @ wv.T)
    scores = q @ k.transpose(0, 1, 3, 2) + attn_bias[:, None, None, :]
    probs = jax.nn.softmax(scores, axis=-1)
    ctx = (probs @ v).transpose(0, 2, 1, 3).reshape(B, S, H)
    attn_out = ctx @ wo.T + x
    h2 = ln(attn_out, g2)
    inter = jax.nn.gelu(h2 @ wi.T, approximate=False)   # exact GELU == F.gelu default
    return inter @ wdown.T + attn_out


if __name__ == "__main__":
    B, S, H, NH, FFN = 2, 16, 32, 4, 64
    eps = 1e-5

    key = jax.random.PRNGKey(0)
    ks = jax.random.split(key, 9)
    init = lambda k, shape: 0.08 * jax.random.normal(k, shape, jnp.float32)

    # PyTorch nn.Linear layout (out_features, in_features), bias-free.
    wq, wk = init(ks[0], (H, H)), init(ks[1], (H, H))
    wv, wo = init(ks[2], (H, H)), init(ks[3], (H, H))
    wi, wdown = init(ks[4], (FFN, H)), init(ks[5], (H, FFN))
    g1 = 1.0 + 0.1 * jax.random.normal(ks[6], (H,), jnp.float32)
    g2 = 1.0 + 0.1 * jax.random.normal(ks[7], (H,), jnp.float32)
    x = jax.random.normal(ks[8], (B, S, H), jnp.float32)

    # HF-style additive attention mask: 0 = attend, -1e9 = masked (padded tail in row 1).
    attn_mask = jnp.ones((B, S), jnp.float32).at[1, 12:].set(0.0)
    attn_bias = (1.0 - attn_mask) * jnp.float32(-1e9)

    out = prolm_layer(x, attn_bias, wq, wk, wv, wo, g1, wi, wdown, g2,
                      num_heads=NH, eps=eps)
    out = jax.block_until_ready(out)

    ref = _reference(x, attn_bias, wq, wk, wv, wo, g1, wi, wdown, g2,
                     num_heads=NH, eps=eps)

    assert out.shape == (B, S, H) and out.dtype == jnp.float32
    max_err = float(jnp.max(jnp.abs(out - ref)))
    # Tolerance accounts for TPU default (bf16-pass) matmul precision in the
    # XLA-compiled reference vs the in-kernel f32-accumulated MXU matmuls.
    assert jnp.allclose(out, ref, atol=1e-2, rtol=1e-2), max_err

    print("KERNEL_OK")
</pallas_src>

<mosaic_0001>
module attributes {stable_mosaic.version = 11 : i64} {
  func.func @_ln_qkv_kernel(%arg0: i32, %arg1: i32, %arg2: memref<1x16x32xf32, #tpu.memory_space<vmem>>, %arg3: memref<1x32xf32, #tpu.memory_space<vmem>>, %arg4: memref<32x96xf32, #tpu.memory_space<vmem>>, %arg5: memref<1x16x96xf32, #tpu.memory_space<vmem>>) attributes {dimension_semantics = [#tpu.dimension_semantics<parallel>, #tpu.dimension_semantics<parallel>], iteration_bounds = array<i64: 2, 1>, scalar_prefetch = 0 : i64, scratch_operands = 0 : i64, tpu.core_type = #tpu.core_type<tc>, window_params = [{transform_indices = @transform_0, window_bounds = array<i64: 1, 16, 32>}, {pipeline_mode = #tpu.pipeline_mode<synchronous>, transform_indices = @transform_1, window_bounds = array<i64: 1, 32>}, {pipeline_mode = #tpu.pipeline_mode<synchronous>, transform_indices = @transform_2, window_bounds = array<i64: 32, 96>}, {transform_indices = @transform_3, window_bounds = array<i64: 1, 16, 96>}]} {
    %c0 = arith.constant 0 : index
    %c0_0 = arith.constant 0 : index
    %c0_1 = arith.constant 0 : index
    %0 = vector.load %arg2[%c0, %c0_0, %c0_1] : memref<1x16x32xf32, #tpu.memory_space<vmem>>, vector<1x16x32xf32>
    %1 = vector.shape_cast %0 : vector<1x16x32xf32> to vector<16x32xf32>
    %cst = arith.constant dense<0.000000e+00> : vector<16xf32>
    %2 = vector.multi_reduction <add>, %1, %cst [1] : vector<16x32xf32> to vector<16xf32>
    %3 = vector.shape_cast %2 : vector<16xf32> to vector<16x1xf32>
    %cst_2 = arith.constant 3.200000e+01 : f32
    %4 = vector.broadcast %cst_2 : f32 to vector<16x1xf32>
    %5 = arith.divf %3, %4 : vector<16x1xf32>
    %6 = arith.mulf %1, %1 : vector<16x32xf32>
    %cst_3 = arith.constant dense<0.000000e+00> : vector<16xf32>
    %7 = vector.multi_reduction <add>, %6, %cst_3 [1] : vector<16x32xf32> to vector<16xf32>
    %8 = vector.shape_cast %7 : vector<16xf32> to vector<16x1xf32>
    %cst_4 = arith.constant 3.200000e+01 : f32
    %9 = vector.broadcast %cst_4 : f32 to vector<16x1xf32>
    %10 = arith.divf %8, %9 : vector<16x1xf32>
    %11 = arith.mulf %5, %5 : vector<16x1xf32>
    %12 = arith.subf %10, %11 : vector<16x1xf32>
    %13 = vector.broadcast %5 : vector<16x1xf32> to vector<16x32xf32>
    %14 = arith.subf %1, %13 : vector<16x32xf32>
    %cst_5 = arith.constant 9.99999974E-6 : f32
    %15 = vector.broadcast %cst_5 : f32 to vector<16x1xf32>
    %16 = arith.addf %12, %15 : vector<16x1xf32>
    %17 = math.rsqrt %16 : vector<16x1xf32>
    %18 = vector.broadcast %17 : vector<16x1xf32> to vector<16x32xf32>
    %19 = arith.mulf %14, %18 : vector<16x32xf32>
    %c0_6 = arith.constant 0 : index
    %c0_7 = arith.constant 0 : index
    %20 = vector.load %arg3[%c0_6, %c0_7] : memref<1x32xf32, #tpu.memory_space<vmem>>, vector<1x32xf32>
    %21 = vector.broadcast %20 : vector<1x32xf32> to vector<16x32xf32>
    %22 = arith.mulf %19, %21 : vector<16x32xf32>
    %c0_8 = arith.constant 0 : index
    %c0_9 = arith.constant 0 : index
    %23 = vector.load %arg4[%c0_8, %c0_9] : memref<32x96xf32, #tpu.memory_space<vmem>>, vector<32x96xf32>
    %cst_10 = arith.constant dense<0.000000e+00> : vector<16x96xf32>
    %24 = tpu.matmul %22, %23, %cst_10 {dimension_numbers = #tpu.dot_dimension_numbers<[1], [0], [0], [1], [0, 0, 1, 1], [], []>} : vector<16x32xf32>, vector<32x96xf32>, vector<16x96xf32> -> vector<16x96xf32>
    %c0_11 = arith.constant 0 : index
    %c0_12 = arith.constant 0 : index
    %c0_13 = arith.constant 0 : index
    %25 = vector.load %arg5[%c0_11, %c0_12, %c0_13] : memref<1x16x96xf32, #tpu.memory_space<vmem>>, vector<1x16x96xf32>
    %26 = vector.shape_cast %25 : vector<1x16x96xf32> to vector<16x96xf32>
    %27 = vector.shape_cast %24 : vector<16x96xf32> to vector<1x16x96xf32>
    tpu.vector_store %arg5[%c0_11, %c0_12, %c0_13], %27 {strides = array<i32>} : memref<1x16x96xf32, #tpu.memory_space<vmem>>, vector<1x16x96xf32>,
    return
  }
  func.func @transform_0(%arg0: i32, %arg1: i32) -> (i32, i32, i32) {
    %c0_i32 = arith.constant 0 : i32
    %c0_i32_0 = arith.constant 0 : i32
    return %arg0, %arg1, %c0_i32 : i32, i32, i32
  }
  func.func @transform_1(%arg0: i32, %arg1: i32) -> (i32, i32) {
    %c0_i32 = arith.constant 0 : i32
    %c0_i32_0 = arith.constant 0 : i32
    %c0_i32_1 = arith.constant 0 : i32
    return %c0_i32, %c0_i32_0 : i32, i32
  }
  func.func @transform_2(%arg0: i32, %arg1: i32) -> (i32, i32) {
    %c0_i32 = arith.constant 0 : i32
    %c0_i32_0 = arith.constant 0 : i32
    %c0_i32_1 = arith.constant 0 : i32
    return %c0_i32, %c0_i32_0 : i32, i32
  }
  func.func @transform_3(%arg0: i32, %arg1: i32) -> (i32, i32, i32) {
    %c0_i32 = arith.constant 0 : i32
    %c0_i32_0 = arith.constant 0 : i32
    return %arg0, %arg1, %c0_i32 : i32, i32, i32
  }
}

</mosaic_0001>

<llo_original>
// kernel: tpu_custom_call.1
$region0: #{tpu_custom_call.1}
  #allocation0 [shape = 'u32[]', space=smem, size = 0x4, offset = 0x4, fixed_abs, tag = 'smem constant byte address 0x4 - core index']
  #allocation1 [shape = 'u32[144,128]{1,0:T(1,128)}', space=vmem, size = 0x12000, scoped, tag = 'internal scratch']
  %s0 = inlined_call_operand.hbm [shape: f32[2,16,32], index: 0, kind: input, shape index: {}]
  %s1 = inlined_call_operand.vmem [shape: f32[1,32], index: 1, kind: input, shape index: {}]
  %s2 = inlined_call_operand.hbm [shape: f32[32,96], index: 2, kind: input, shape index: {}]
  %s3 = inlined_call_operand.hbm [shape: f32[2,16,96], index: 3, kind: output, shape index: {}]
  %s4 = sld [smem:[#allocation0]]
  $region53: #{tpu_custom_call.1} parent=0
    _
  %s6 = ssub.s32 1, %s4
  %s7 = scalar_select 0, %s6, %s4
  $region1: #{tpu_custom_call.1} parent=0
    #allocation2 [shape = 'u8[16384]{0}', space=vmem, size = 0x4000, scoped, tag = 'input window, operand 0']
    #allocation3 [shape = 's32[2]{0}', space=sflag, size = 0x8, scoped, tag = 'scoped memory for tpu_custom_call.1']
    #allocation4 [shape = 's32[2]{0}', space=sflag, size = 0x8, scoped, tag = 'scoped memory for tpu_custom_call.1']
    #allocation5 [shape = 'u8[16384]{0}', space=vmem, size = 0x4000, scoped, tag = 'input window, operand 2, single buffered']
    #allocation6 [shape = 's32[1]{0}', space=sflag, size = 0x4, scoped, tag = 'scoped memory for tpu_custom_call.1']
    #allocation7 [shape = 'u8[16384]{0}', space=vmem, size = 0x4000, scoped, tag = 'output window, operand 0']
    %8 = vsyncpa [#allocation3], 0
    %s9 = scalar_lea.sflag [#allocation3], 1
    %10 = vsyncpa %s9, 0
    %11 = vsyncpa [#allocation6], 0
    %12 = vsyncpa [#allocation4], 0
    %s13 = scalar_lea.sflag [#allocation4], 1
    %14 = vsyncpa %s13, 0
    loop: start=0, step=1, limit=4
    $region2: #{tpu_custom_call.1} parent=1 // loop_pre_header
      _
    $region3: #{tpu_custom_call.1} parent=1 // loop_header
      %s16 = sphi 0, %s20
      %p17 = scmp.ge.s32.totalorder %s16, 4
      %s23 = sphi 0, %s35
      %s24 = sphi 0, %s31
      %s25 = sphi 0, %s23
      %s26 = sphi 0, %s24
      %s27 = sphi 0, %s25
      %s28 = sphi 0, %s26
      %s40 = sphi 0, %s42
      %s43 = sphi 0, %s40
      %s44 = sphi 0, %s43
      %s60 = sphi 0, %s44
      %s64 = sphi 0, %s64
      %s66 = sphi 0, %s64
      %s67 = sphi 0, %s66
      %s81 = sphi 0, %s67
      %s85 = sphi 0, %s85
      %s87 = sphi 0, %s85
      %s88 = sphi 0, %s87
      %s102 = sphi 0, %s88
      %s110 = sphi 0, %s112
      %s113 = sphi 0, %s110
      %s114 = sphi 0, %s113
      %s130 = sphi 0, %s114
    $region4: #{tpu_custom_call.1} parent=1 // loop_header_branch
      %19 = sbr.rel (%p17) target = $region8
    $region5: #{tpu_custom_call.1} parent=1 // loop_body
      %s21 = ssub.s32 %s16, 1
      %s22 = ssub.s32 %s16, 2
      %s29 = sadd.s32 1, %s24
      %p30 = scmp.ge.s32.totalorder %s29, 1
      %s31 = scalar_select %p30, 0, %s29
      %s32 = sadd.s32 1, %s23
      %s33 = scalar_select %p30, %s32, %s23
      %p34 = scmp.ge.s32.totalorder %s33, 2
      %s35 = scalar_select %p34, 0, %s33
      %s36 = ssub.s32 %s23, %s35
      %s37 = ssub.s32 %s24, %s31
      %s38 = sor.u32 %s36, %s37
      %p39 = scmp.eq.s32.totalorder %s38, 0
      %s41 = sadd.s32 %s40, 1
      %s42 = scalar_select %p39, %s40, %s41
      %p45 = pneg %p39
      %p46 = scmp.eq.s32.totalorder %s16, 1
      %p47 = por %p45, %p46
      %p48 = scmp.ne.s32.totalorder %s40, %s43
      %p49 = scmp.eq.s32.totalorder %s16, 0
      %p50 = por %p48, %p49
      %p51 = scmp.ne.s32.totalorder %s40, %s43
      %p52 = scmp.eq.s32.totalorder %s21, 1
      %p53 = por %p51, %p52
      %p54 = scmp.ne.s32.totalorder %s43, %s44
      %p55 = scmp.eq.s32.totalorder %s21, 0
      %p56 = por %p54, %p55
      %p57 = scmp.ne.s32.totalorder %s43, %s44
      %p58 = scmp.eq.s32.totalorder %s22, 1
      %p59 = por %p57, %p58
      %p61 = scmp.ne.s32.totalorder %s44, %s60
      %p62 = scmp.eq.s32.totalorder %s22, 0
      %p63 = por %p61, %p62
      %s65 = sadd.s32 %s64, 1
      %p68 = scmp.eq.s32.totalorder %s16, 1
      %p69 = scmp.ne.s32.totalorder %s64, %s66
      %p70 = scmp.eq.s32.totalorder %s16, 0
      %p71 = por %p69, %p70
      %p72 = scmp.ne.s32.totalorder %s64, %s66
      %p73 = scmp.eq.s32.totalorder %s21, 1
      %p74 = por %p72, %p73
      %p75 = scmp.ne.s32.totalorder %s66, %s67
      %p76 = scmp.eq.s32.totalorder %s21, 0
      %p77 = por %p75, %p76
      %p78 = scmp.ne.s32.totalorder %s66, %s67
      %p79 = scmp.eq.s32.totalorder %s22, 1
      %p80 = por %p78, %p79
      %p82 = scmp.ne.s32.totalorder %s67, %s81
      %p83 = scmp.eq.s32.totalorder %s22, 0
      %p84 = por %p82, %p83
      %s86 = sadd.s32 %s85, 1
      %p89 = scmp.eq.s32.totalorder %s16, 1
      %p90 = scmp.ne.s32.totalorder %s85, %s87
      %p91 = scmp.eq.s32.totalorder %s16, 0
      %p92 = por %p90, %p91
      %p93 = scmp.ne.s32.totalorder %s85, %s87
      %p94 = scmp.eq.s32.totalorder %s21, 1
      %p95 = por %p93, %p94
      %p96 = scmp.ne.s32.totalorder %s87, %s88
      %p97 = scmp.eq.s32.totalorder %s21, 0
      %p98 = por %p96, %p97
      %p99 = scmp.ne.s32.totalorder %s87, %s88
      %p100 = scmp.eq.s32.totalorder %s22, 1
      %p101 = por %p99, %p100
      %p103 = scmp.ne.s32.totalorder %s88, %s102
      %p104 = scmp.eq.s32.totalorder %s22, 0
      %p105 = por %p103, %p104
      %s106 = ssub.s32 %s23, %s35
      %s107 = ssub.s32 %s24, %s31
      %s108 = sor.u32 %s106, %s107
      %p109 = scmp.eq.s32.totalorder %s108, 0
      %s111 = sadd.s32 %s110, 1
      %s112 = scalar_select %p109, %s110, %s111
      %p115 = pneg %p109
      %p116 = scmp.eq.s32.totalorder %s16, 1
      %p117 = por %p115, %p116
      %p118 = scmp.ne.s32.totalorder %s110, %s113
      %p119 = scmp.eq.s32.totalorder %s16, 0
      %p120 = por %p118, %p119
      %p121 = scmp.ne.s32.totalorder %s110, %s113
      %p122 = scmp.eq.s32.totalorder %s21, 1
      %p123 = por %p121, %p122
      %p124 = scmp.ne.s32.totalorder %s113, %s114
      %p125 = scmp.eq.s32.totalorder %s21, 0
      %p126 = por %p124, %p125
      %p127 = scmp.ne.s32.totalorder %s113, %s114
      %p128 = scmp.eq.s32.totalorder %s22, 1
      %p129 = por %p127, %p128
      %p131 = scmp.ne.s32.totalorder %s114, %s130
      %p132 = scmp.eq.s32.totalorder %s22, 0
      %p133 = por %p131, %p132
      %p134 = scmp.le.s32.totalorder 1, %s16
      %p135 = scmp.lt.s32.totalorder %s16, 3
      %p136 = pnand %p134, %p135
      %p137 = pneg %p136
      // Predicated region
      $region9: #{tpu_custom_call.1} parent=5 // pred_check
        _
      $region10: #{tpu_custom_call.1} parent=5 // pred_check_branch
        %139 = sbr.rel (%p136) target = $region12
      $region11: #{tpu_custom_call.1} parent=5 // pred_region
        %s140 = ssub.s32 %s16, 1
        // Predicated region
        $region13: #{tpu_custom_call.1} parent=11 // pred_check
          %p141 = pneg %p77
        $region14: #{tpu_custom_call.1} parent=11 // pred_check_branch
          %143 = sbr.rel (%p141) target = $region16
        $region15: #{tpu_custom_call.1} parent=11 // pred_region
          _
        $region16: #{tpu_custom_call.1} parent=11 // pred_fallthru
          _
        // Predicated region
        $region17: #{tpu_custom_call.1} parent=11 // pred_check
          %p144 = pneg %p98
        $region18: #{tpu_custom_call.1} parent=11 // pred_check_branch
          %146 = sbr.rel (%p144) target = $region20
        $region19: #{tpu_custom_call.1} parent=11 // pred_region
          %s148 = ssub.s32 512, 512
          %149 = vsyncadd [#allocation6], %s148
          %s150 = sshll.u32 [#allocation5], 4
          %s151 = int_to_ptr.vmem [resolvable:$true] %s150
          %156 = dma.hbm_to_vmem [thread:$0]  %s2, 512, %s151, [#allocation6], 128, 128, 8
        $region20: #{tpu_custom_call.1} parent=11 // pred_fallthru
          _
      $region12: #{tpu_custom_call.1} parent=5 // pred_fallthru
        _
      %p157 = scmp.lt.s32.totalorder %s16, 2
      // Predicated region
      $region21: #{tpu_custom_call.1} parent=5 // pred_check
        %p158 = pneg %p157
      $region22: #{tpu_custom_call.1} parent=5 // pred_check_branch
        %160 = sbr.rel (%p158) target = $region24
      $region23: #{tpu_custom_call.1} parent=5 // pred_region
        // Predicated region
        $region25: #{tpu_custom_call.1} parent=23 // pred_check
          %p161 = pneg %p50
        $region26: #{tpu_custom_call.1} parent=23 // pred_check_branch
          %163 = sbr.rel (%p161) target = $region28
        $region27: #{tpu_custom_call.1} parent=23 // pred_region
          %s164 = sand.u32 %s40, 1
          %s165 = scalar_lea.sflag [#allocation3], %s164
          %s166 = sand.u32 %s40, 1
          %s167 = smul.addr %s166, 16
          %s168 = scalar_lea.vmem [#allocation2], %s167
          %s169 = smul.u32 2, %s24
          %s171 = ssub.s32 256, 256
          %172 = vsyncadd %s165, %s171
          %s173 = smul.addr %s23, 2
          %s174 = sadd.s32 %s169, %s173
          %s175 = smul.addr %s174, 128
          %s176 = scalar_lea.hbm %s0, %s175
          %s177 = sshll.u32 %s168, 4
          %s178 = int_to_ptr.vmem [resolvable:$true] %s177
          %183 = dma.hbm_to_vmem [thread:$0]  %s176, 256, %s178, %s165, 128, 128, 8
        $region28: #{tpu_custom_call.1} parent=23 // pred_fallthru
          _
      $region24: #{tpu_custom_call.1} parent=5 // pred_fallthru
        _
      %p184 = scmp.le.s32.totalorder 1, %s16
      %p185 = scmp.lt.s32.totalorder %s16, 3
      %p186 = pnand %p184, %p185
      %p187 = pneg %p186
      // Predicated region
      $region29: #{tpu_custom_call.1} parent=5 // pred_check
        _
      $region30: #{tpu_custom_call.1} parent=5 // pred_check_branch
        %189 = sbr.rel (%p186) target = $region32
      $region31: #{tpu_custom_call.1} parent=5 // pred_region
        %s190 = ssub.s32 %s16, 1
        %s191 = sand.u32 %s43, 1
        %s192 = scalar_lea.sflag [#allocation3], %s191
        %s193 = sand.u32 %s43, 1
        %s194 = smul.addr %s193, 16
        %s195 = scalar_lea.vmem [#allocation2], %s194
        // Predicated region
        $region33: #{tpu_custom_call.1} parent=31 // pred_check
          %p196 = pneg %p56
        $region34: #{tpu_custom_call.1} parent=31 // pred_check_branch
          %198 = sbr.rel (%p196) target = $region36
        $region35: #{tpu_custom_call.1} parent=31 // pred_region
          %199 = dma.done %s192, 256
        $region36: #{tpu_custom_call.1} parent=31 // pred_fallthru
          _
        // Predicated region
        $region37: #{tpu_custom_call.1} parent=31 // pred_check
          %p200 = pneg %p98
        $region38: #{tpu_custom_call.1} parent=31 // pred_check_branch
          %202 = sbr.rel (%p200) target = $region40
        $region39: #{tpu_custom_call.1} parent=31 // pred_region
          %203 = dma.done [#allocation6], 512
        $region40: #{tpu_custom_call.1} parent=31 // pred_fallthru
          _
        %s204 = sand.u32 %s43, 1
        %s205 = scalar_lea.sflag [#allocation3], %s204
        %s206 = sand.u32 %s43, 1
        %s207 = smul.addr %s206, 16
        %s208 = scalar_lea.vmem [#allocation2], %s207
        %p209 = pneg %p56
        %p210 = pneg %p53
        %p211 = pneg %p77
        %p212 = pneg %p74
        %p213 = pneg %p98
        %p214 = pneg %p95
        %p215 = pneg %p126
        %p216 = pneg %p123
        %s217 = sand.u32 %s113, 1
        %s218 = scalar_lea.sflag [#allocation4], %s217
        %s219 = sand.u32 %s113, 1
        %s220 = smul.addr %s219, 16
        %s221 = scalar_lea.vmem [#allocation7], %s220
        %s222 = smul.u32 2, %s26
        %s223 = smul.u32 2, %s26
        %v224 = vld [vmem:[%s195] sm:$0xff]
        %v225 = vld [vmem:[%s195 + $0x8] sm:$0xff]
        %vm226 = vcmask 261120
        %v227 = vsel %vm226, %v224, 0.0
        %228 = vadd.xlane.f32.xlu0 %v227
        %v229 = vpop.xlane.xlu0 %228
        %v230 = vsel %vm226, %v225, 0.0
        %231 = vadd.xlane.f32.xlu0 %v230
        %v232 = vpop.xlane.xlu0 %231
        %v233 = vrcp.pop 32.0
        %v234 = vmul.f32 %v229, %v233
        %v235 = vmul.f32 %v232, %v233
        %v236 = vmul.f32 %v224, %v224
        %v237 = vmul.f32 %v225, %v225
        %v238 = vsel %vm226, %v236, 0.0
        %239 = vadd.xlane.f32.xlu0 %v238
        %v240 = vpop.xlane.xlu0 %239
        %v241 = vsel %vm226, %v237, 0.0
        %242 = vadd.xlane.f32.xlu0 %v241
        %v243 = vpop.xlane.xlu0 %242
        %v244 = vmul.f32 %v240, %v233
        %v245 = vmul.f32 %v243, %v233
        %v246 = vmul.f32 %v234, %v234
        %v247 = vmul.f32 %v235, %v235
        %v248 = vsub.f32 %v244, %v246
        %v249 = vsub.f32 %v245, %v247
        %v250 = vsub.f32 %v224, %v234
        %v251 = vsub.f32 %v225, %v235
        %v252 = vadd.f32 %v248, 1e-05
        %v253 = vadd.f32 %v249, 1e-05
        %v254 = vrsqrt.pop %v252
        %v255 = vrsqrt.pop %v253
        %v256 = vmul.f32 %v250, %v254
        %v257 = vmul.f32 %v251, %v255
        %v258 = vld [vmem:[%s1] sm:$0x1]
        %v260 = vlaneseq
        %v261 = vshrl.u32 %v260, 7
        %v262 = vsub.s32 0, %v261
        %v263 = vrot.slane %v258, %v262
        %v265 = vmul.f32 %v256, %v263
        %v266 = vmul.f32 %v257, %v263
        %v267 = vld [vmem:[#allocation5] sm:$0xff]
        %v268 = vld [vmem:[#allocation5 + $0x8] sm:$0xff]
        %v269 = vld [vmem:[#allocation5 + $0x10] sm:$0xff]
        %v270 = vld [vmem:[#allocation5 + $0x18] sm:$0xff]
        %v272 = vsel %vm226, %v265, 0
        %v275 = vsel %vm226, %v266, 0
        %277 = vmatprep.subr.mxu0 0.0
        %278 = vmatpush1.msra.mxu0 %v267
        %279 = vmatprep.subr.mxu0 0.0
        %280 = vmatpush1.msra.mxu0 %v268
        %281 = vmatprep.subr.mxu0 0.0
        %282 = vmatpush1.msra.mxu0 %v269
        %283 = vmatprep.subr.mxu0 0.0
        %284 = vmatpush1.msra.mxu0 %v270
        %285 = vmatprep.subr.mxu0 0.0
        %286 = vmatpush1.msra.mxu0 0.0
        %287 = vmatprep.subr.mxu0 0.0
        %288 = vmatpush1.msra.mxu0 0.0
        %289 = vmatprep.subr.mxu0 0.0
        %290 = vmatpush1.msra.mxu0 0.0
        %291 = vmatprep.subr.mxu0 0.0
        %292 = vmatpush1.msra.mxu0 0.0
        %293 = vmatprep.subr.mxu0 0.0
        %294 = vmatpush1.msra.mxu0 0.0
        %295 = vmatprep.subr.mxu0 0.0
        %296 = vmatpush1.msra.mxu0 0.0
        %297 = vmatprep.subr.mxu0 0.0
        %298 = vmatpush1.msra.mxu0 0.0
        %299 = vmatprep.subr.mxu0 0.0
        %300 = vmatpush1.msra.mxu0 0.0
        %301 = vmatprep.subr.mxu0 0.0
        %302 = vmatpush1.msra.mxu0 0.0
        %303 = vmatprep.subr.mxu0 0.0
        %304 = vmatpush1.msra.mxu0 0.0
        %305 = vmatprep.subr.mxu0 0.0
        %306 = vmatpush1.msra.mxu0 0.0
        %307 = vmatprep.subr.mxu0 0.0
        %308 = vmatpush1.msra.mxu0 0.0
        %309 = vmatprep.subr.mxu0 0.0
        %310 = vmatpush1.msra.mxu0 0.0
        %311 = vmatprep.subr.mxu0 0.0
        %312 = vmatpush1.msra.mxu0 0.0
        %313 = vmatprep.subr.mxu0 0.0
        %314 = vmatpush1.msra.mxu0 0.0
        %315 = vmatprep.subr.mxu0 0.0
        %316 = vmatpush1.msra.mxu0 0.0
        %317 = vmatprep.subr.mxu0 0.0
        %318 = vmatpush1.msra.mxu0 0.0
        %319 = vmatprep.subr.mxu0 0.0
        %320 = vmatpush1.msra.mxu0 0.0
        %321 = vmatprep.subr.mxu0 0.0
        %322 = vmatpush1.msra.mxu0 0.0
        %323 = vmatprep.subr.mxu0 0.0
        %324 = vmatpush1.msra.mxu0 0.0
        %325 = vmatprep.subr.mxu0 0.0
        %326 = vmatpush1.msra.mxu0 0.0
        %327 = vmatprep.subr.mxu0 0.0
        %328 = vmatpush1.msra.mxu0 0.0
        %329 = vmatprep.subr.mxu0 0.0
        %330 = vmatpush1.msra.mxu0 0.0
        %331 = vmatprep.subr.mxu0 0.0
        %332 = vmatpush1.msra.mxu0 0.0
        %333 = vmatprep.subr.mxu0 0.0
        %334 = vmatpush1.msra.mxu0 0.0
        %335 = vmatprep.subr.mxu0 0.0
        %336 = vmatpush1.msra.mxu0 0.0
        %337 = vmatprep.subr.mxu0 0.0
        %338 = vmatpush1.msra.mxu0 0.0
        %339 = vmatprep.subr.mxu0 0.0
        %340 = vmatpush1.msra.mxu0 0.0
        %341 = vmatprep.mubr.f32.mxu0 0.0
        %342 = vmatmul.mubr.f32.gmra.mrb[0].mxu0 %v272
        %v343 = vpop.f32.mrb[0].mxu0
        %v344 = vadd.f32 0.0, %v343
        %v345 = vpop.f32.mrb[0].mxu0
        %346 = vmatprep.mubr.f32.mxu0 0.0
        %347 = vmatmul.mubr.f32.gmra.mrb[0].mxu0 %v275
        %v348 = vpop.f32.mrb[0].mxu0
        %v349 = vadd.f32 0.0, %v348
        %v350 = vpop.f32.mrb[0].mxu0
        %351 = vdwg.mxu0
        %vm352 = vcmask 785408
        %353 = vst.msk [vmem:[%s221] sm:$0xff] %vm352, %v344
        %354 = vst.msk [vmem:[%s221 + $0x8] sm:$0xff] %vm352, %v349
        %s355 = sand.u32 %s113, 1
        %s356 = scalar_lea.sflag [#allocation4], %s355
        %s357 = sand.u32 %s113, 1
        %s358 = smul.addr %s357, 16
        %s359 = scalar_lea.vmem [#allocation7], %s358
        // Predicated region
        $region41: #{tpu_custom_call.1} parent=31 // pred_check
          %p360 = pneg %p123
        $region42: #{tpu_custom_call.1} parent=31 // pred_check_branch
          %362 = sbr.rel (%p360) target = $region44
        $region43: #{tpu_custom_call.1} parent=31 // pred_region
          %s363 = smul.u32 2, %s26
          %s365 = ssub.s32 256, 256
          %366 = vsyncadd %s356, %s365
          %s367 = smul.addr %s25, 2
          %s368 = sadd.s32 %s363, %s367
          %s369 = smul.addr %s368, 128
          %s370 = scalar_lea.hbm %s3, %s369
          %s371 = sshll.u32 %s359, 4
          %s372 = int_to_ptr.vmem [resolvable:$true] %s371
          %377 = dma.vmem_to_hbm [thread:$0]  %s372, 256, %s370, %s356, 128, 128, 8
        $region44: #{tpu_custom_call.1} parent=31 // pred_fallthru
          _
      $region32: #{tpu_custom_call.1} parent=5 // pred_fallthru
        _
      %p378 = scmp.le.s32.totalorder 2, %s16
      // Predicated region
      $region45: #{tpu_custom_call.1} parent=5 // pred_check
        %p379 = pneg %p378
      $region46: #{tpu_custom_call.1} parent=5 // pred_check_branch
        %381 = sbr.rel (%p379) target = $region48
      $region47: #{tpu_custom_call.1} parent=5 // pred_region
        %s382 = ssub.s32 %s16, 2
        // Predicated region
        $region49: #{tpu_custom_call.1} parent=47 // pred_check
          %p383 = pneg %p129
        $region50: #{tpu_custom_call.1} parent=47 // pred_check_branch
          %385 = sbr.rel (%p383) target = $region52
        $region51: #{tpu_custom_call.1} parent=47 // pred_region
          %s386 = sand.u32 %s114, 1
          %s387 = scalar_lea.sflag [#allocation4], %s386
          %s388 = sand.u32 %s114, 1
          %s389 = smul.addr %s388, 16
          %s390 = scalar_lea.vmem [#allocation7], %s389
          %391 = dma.done %s387, 256
        $region52: #{tpu_custom_call.1} parent=47 // pred_fallthru
          _
      $region48: #{tpu_custom_call.1} parent=5 // pred_fallthru
        _
    $region6: #{tpu_custom_call.1} parent=1 // loop_footer
      %s20 = sadd.s32 1, %s16
    $region7: #{tpu_custom_call.1} parent=1 // loop_footer_branch
      %15 = sbr.rel target = $region3
    $region8: #{tpu_custom_call.1} parent=1 // loop_exit
      _
    %392 = vsyncpa [#allocation3], 1
    %s393 = scalar_lea.sflag [#allocation3], 1
    %394 = vsyncpa %s393, 1
    %395 = vsyncpa [#allocation6], 1
    %396 = vsyncpa [#allocation4], 1
    %s397 = scalar_lea.sflag [#allocation4], 1
    %398 = vsyncpa %s397, 1

</llo_original>
